<compile_context>
chip_gen: v5e
topology: v5e:2x2
jax: 0.10.0
libtpu: 0.0.40
codegen_flags: <defaults>
</compile_context>

<pallas_src>
import jax
import jax.numpy as jnp
from jax.experimental import pallas as pl
from jax.experimental.pallas import tpu as pltpu


def fusion_kernel(x_ref, w1_ref, b1_ref, w2_ref, b2_ref, w3_ref, b3_ref, out_ref):
    cdt = w1_ref.dtype  # matmul compute dtype (bf16 by default), f32 accumulation

    # fc1 + relu
    h1 = jnp.dot(x_ref[...], w1_ref[...],
                 preferred_element_type=jnp.float32) + b1_ref[...]
    h1 = jnp.maximum(h1, 0.0)
    # TODO(synk): nn.Dropout is identity in eval mode; training-mode dropout
    # (pltpu.prng_random_bits masking) intentionally not applied here.

    # fc2 + relu
    h2 = jnp.dot(h1.astype(cdt), w2_ref[...],
                 preferred_element_type=jnp.float32) + b2_ref[...]
    h2 = jnp.maximum(h2, 0.0)

    # fc3 + sigmoid. Output width is padded to a multiple of 128 (lane-dense,
    # unmasked stores); exp and approx-reciprocal both execute on the EUP slot.
    h3 = jnp.dot(h2.astype(cdt), w3_ref[...],
                 preferred_element_type=jnp.float32) + b3_ref[...]
    sig = pl.reciprocal(1.0 + jnp.exp(-h3), approx=True)
    out_ref[...] = sig.astype(out_ref.dtype)


def fusion_forward(drug, cell, params, *, tile_b=256, compute_dtype=jnp.bfloat16):
    """drug: (B, Dd) f32, cell: (B, Dc) f32. Returns (B, F3) f32."""
    w1, b1, w2, b2, w3, b3 = params
    B = drug.shape[0]

    # Concat fusion done in the wrapper -> single lane-dense activation input.
    x = jnp.concatenate([drug, cell], axis=1)
    Din = x.shape[1]
    F1 = w1.shape[1]
    F2 = w2.shape[1]
    F3 = w3.shape[1]

    # Lane-dense output: pad fc3 width up to a multiple of 128 with zero weights/bias.
    F3p = max(128, ((F3 + 127) // 128) * 128)
    w3p = jnp.zeros((F2, F3p), w3.dtype).at[:, :F3].set(w3)
    b3p = jnp.zeros((1, F3p), b3.dtype).at[:, :F3].set(b3)

    # Batch tile: as large as possible (multiple of 8), fall back for tiny B.
    tile_b = min(tile_b, B)
    assert B % tile_b == 0, "batch must be divisible by tile_b"
    assert tile_b == B or tile_b % 8 == 0

    # bf16 (or chosen dtype) feeds the MXU; biases stay f32 (added post-accumulation).
    xc = x.astype(compute_dtype)
    w1c = w1.astype(compute_dtype)
    w2c = w2.astype(compute_dtype)
    w3c = w3p.astype(compute_dtype)
    b1f = b1.astype(jnp.float32)
    b2f = b2.astype(jnp.float32)
    b3f = b3p.astype(jnp.float32)

    batch_spec = lambda shape: pl.BlockSpec(shape, lambda i: (i, 0))
    resident_spec = lambda shape: pl.BlockSpec(shape, lambda i: (0, 0))

    out_padded = pl.pallas_call(
        fusion_kernel,
        out_shape=jax.ShapeDtypeStruct((B, F3p), jnp.float32),
        grid_spec=pl.GridSpec(
            grid=(B // tile_b,),
            in_specs=[
                batch_spec((tile_b, Din)),     # x (concat of drug, cell)
                resident_spec((Din, F1)),      # W1
                resident_spec((1, F1)),        # b1
                resident_spec((F1, F2)),       # W2
                resident_spec((1, F2)),        # b2
                resident_spec((F2, F3p)),      # W3 (lane-padded)
                resident_spec((1, F3p)),       # b3 (lane-padded)
            ],
            out_specs=batch_spec((tile_b, F3p)),
        ),
        compiler_params=pltpu.CompilerParams(
            dimension_semantics=("parallel",),
            vmem_limit_bytes=32 * 1024 * 1024,
        ),
    )(xc, w1c, b1f, w2c, b2f, w3c, b3f)

    return out_padded[:, :F3]


def init_params(key, drug_dim, cell_dim, fc1_dim, fc2_dim, fc3_dim):
    """Deterministic PyTorch-style (uniform +/- 1/sqrt(fan_in)) init.

    Weights are stored [in_features, out_features] (transpose of nn.Linear),
    biases as [1, out_features].
    """
    def linear(k, fan_in, fan_out):
        kw, kb = jax.random.split(k)
        bound = 1.0 / jnp.sqrt(fan_in)
        w = jax.random.uniform(kw, (fan_in, fan_out), jnp.float32, -bound, bound)
        b = jax.random.uniform(kb, (1, fan_out), jnp.float32, -bound, bound)
        return w, b

    k1, k2, k3 = jax.random.split(key, 3)
    in_dim = drug_dim + cell_dim
    w1, b1 = linear(k1, in_dim, fc1_dim)
    w2, b2 = linear(k2, fc1_dim, fc2_dim)
    w3, b3 = linear(k3, fc2_dim, fc3_dim)
    return (w1, b1, w2, b2, w3, b3)


def fusion_reference(drug, cell, params):
    """Pure-JAX f32 reference matching the PyTorch forward."""
    w1, b1, w2, b2, w3, b3 = params
    x = jnp.concatenate([drug, cell], axis=1)
    x = jax.nn.relu(x @ w1 + b1)
    x = jax.nn.relu(x @ w2 + b2)
    return jax.nn.sigmoid(x @ w3 + b3)


if __name__ == "__main__":
    # Shapes consistent with the module: drug_dim=16, cell_dim=16 -> input_dim=32,
    # fc_1_dim=32, fc_2_dim=16, fc_3_dim=1 (binary response score).
    # batch=512 with tile_b=256 -> 2 parallel grid steps (exercises megacore path).
    B, Dd, Dc = 512, 16, 16
    F1, F2, F3 = 32, 16, 1

    key = jax.random.PRNGKey(0)
    kd, kc, kp = jax.random.split(key, 3)
    drug = jax.random.normal(kd, (B, Dd), jnp.float32)
    cell = jax.random.normal(kc, (B, Dc), jnp.float32)
    params = init_params(kp, Dd, Dc, F1, F2, F3)

    out = fusion_forward(drug, cell, params, tile_b=256)
    out = jax.block_until_ready(out)

    ref = fusion_reference(drug, cell, params)
    assert out.shape == (B, F3)
    max_err = float(jnp.max(jnp.abs(out - ref)))
    # bf16 matmul inputs + approx reciprocal -> compare with a loose absolute tol.
    assert max_err < 3e-2, f"mismatch vs reference: max_err={max_err}"
    print("KERNEL_OK")
</pallas_src>

<mosaic_0001>
module attributes {stable_mosaic.version = 11 : i64} {
  func.func @fusion_kernel(%arg0: i32, %arg1: memref<256x32xbf16, #tpu.memory_space<vmem>>, %arg2: memref<32x32xbf16, #tpu.memory_space<vmem>>, %arg3: memref<1x32xf32, #tpu.memory_space<vmem>>, %arg4: memref<32x16xbf16, #tpu.memory_space<vmem>>, %arg5: memref<1x16xf32, #tpu.memory_space<vmem>>, %arg6: memref<16x128xbf16, #tpu.memory_space<vmem>>, %arg7: memref<1x128xf32, #tpu.memory_space<vmem>>, %arg8: memref<256x128xf32, #tpu.memory_space<vmem>>) attributes {dimension_semantics = [#tpu.dimension_semantics<parallel>], iteration_bounds = array<i64: 2>, scalar_prefetch = 0 : i64, scratch_operands = 0 : i64, tpu.core_type = #tpu.core_type<tc>, window_params = [{transform_indices = @transform_0, window_bounds = array<i64: 256, 32>}, {pipeline_mode = #tpu.pipeline_mode<synchronous>, transform_indices = @transform_1, window_bounds = array<i64: 32, 32>}, {pipeline_mode = #tpu.pipeline_mode<synchronous>, transform_indices = @transform_2, window_bounds = array<i64: 1, 32>}, {pipeline_mode = #tpu.pipeline_mode<synchronous>, transform_indices = @transform_3, window_bounds = array<i64: 32, 16>}, {pipeline_mode = #tpu.pipeline_mode<synchronous>, transform_indices = @transform_4, window_bounds = array<i64: 1, 16>}, {pipeline_mode = #tpu.pipeline_mode<synchronous>, transform_indices = @transform_5, window_bounds = array<i64: 16, 128>}, {pipeline_mode = #tpu.pipeline_mode<synchronous>, transform_indices = @transform_6, window_bounds = array<i64: 1, 128>}, {transform_indices = @transform_7, window_bounds = array<i64: 256, 128>}]} {
    %c0 = arith.constant 0 : index
    %c0_0 = arith.constant 0 : index
    %0 = vector.load %arg1[%c0, %c0_0] : memref<256x32xbf16, #tpu.memory_space<vmem>>, vector<256x32xbf16>
    %c0_1 = arith.constant 0 : index
    %c0_2 = arith.constant 0 : index
    %1 = vector.load %arg2[%c0_1, %c0_2] : memref<32x32xbf16, #tpu.memory_space<vmem>>, vector<32x32xbf16>
    %cst = arith.constant dense<0.000000e+00> : vector<256x32xf32>
    %2 = tpu.matmul %0, %1, %cst {dimension_numbers = #tpu.dot_dimension_numbers<[1], [0], [0], [1], [0, 0, 1, 1], [], []>} : vector<256x32xbf16>, vector<32x32xbf16>, vector<256x32xf32> -> vector<256x32xf32>
    %c0_3 = arith.constant 0 : index
    %c0_4 = arith.constant 0 : index
    %3 = vector.load %arg3[%c0_3, %c0_4] : memref<1x32xf32, #tpu.memory_space<vmem>>, vector<1x32xf32>
    %4 = vector.broadcast %3 : vector<1x32xf32> to vector<256x32xf32>
    %5 = arith.addf %2, %4 : vector<256x32xf32>
    %cst_5 = arith.constant 0.000000e+00 : f32
    %6 = vector.broadcast %cst_5 : f32 to vector<256x32xf32>
    %7 = arith.maximumf %5, %6 : vector<256x32xf32>
    %8 = arith.truncf %7 : vector<256x32xf32> to vector<256x32xbf16>
    %c0_6 = arith.constant 0 : index
    %c0_7 = arith.constant 0 : index
    %9 = vector.load %arg4[%c0_6, %c0_7] : memref<32x16xbf16, #tpu.memory_space<vmem>>, vector<32x16xbf16>
    %cst_8 = arith.constant dense<0.000000e+00> : vector<256x16xf32>
    %10 = tpu.matmul %8, %9, %cst_8 {dimension_numbers = #tpu.dot_dimension_numbers<[1], [0], [0], [1], [0, 0, 1, 1], [], []>} : vector<256x32xbf16>, vector<32x16xbf16>, vector<256x16xf32> -> vector<256x16xf32>
    %c0_9 = arith.constant 0 : index
    %c0_10 = arith.constant 0 : index
    %11 = vector.load %arg5[%c0_9, %c0_10] : memref<1x16xf32, #tpu.memory_space<vmem>>, vector<1x16xf32>
    %12 = vector.broadcast %11 : vector<1x16xf32> to vector<256x16xf32>
    %13 = arith.addf %10, %12 : vector<256x16xf32>
    %cst_11 = arith.constant 0.000000e+00 : f32
    %14 = vector.broadcast %cst_11 : f32 to vector<256x16xf32>
    %15 = arith.maximumf %13, %14 : vector<256x16xf32>
    %16 = arith.truncf %15 : vector<256x16xf32> to vector<256x16xbf16>
    %c0_12 = arith.constant 0 : index
    %c0_13 = arith.constant 0 : index
    %17 = vector.load %arg6[%c0_12, %c0_13] : memref<16x128xbf16, #tpu.memory_space<vmem>>, vector<16x128xbf16>
    %cst_14 = arith.constant dense<0.000000e+00> : vector<256x128xf32>
    %18 = tpu.matmul %16, %17, %cst_14 {dimension_numbers = #tpu.dot_dimension_numbers<[1], [0], [0], [1], [0, 0, 1, 1], [], []>} : vector<256x16xbf16>, vector<16x128xbf16>, vector<256x128xf32> -> vector<256x128xf32>
    %c0_15 = arith.constant 0 : index
    %c0_16 = arith.constant 0 : index
    %19 = vector.load %arg7[%c0_15, %c0_16] : memref<1x128xf32, #tpu.memory_space<vmem>>, vector<1x128xf32>
    %20 = vector.broadcast %19 : vector<1x128xf32> to vector<256x128xf32>
    %21 = arith.addf %18, %20 : vector<256x128xf32>
    %cst_17 = arith.constant 0.000000e+00 : f32
    %22 = vector.broadcast %cst_17 : f32 to vector<256x128xf32>
    %23 = arith.subf %22, %21 : vector<256x128xf32>
    %24 = math.exp %23 : vector<256x128xf32>
    %cst_18 = arith.constant 1.000000e+00 : f32
    %25 = vector.broadcast %cst_18 : f32 to vector<256x128xf32>
    %26 = arith.addf %25, %24 : vector<256x128xf32>
    %27 = tpu.reciprocal %26 {approx = true} : vector<256x128xf32> -> vector<256x128xf32>
    %c0_19 = arith.constant 0 : index
    %c0_20 = arith.constant 0 : index
    %28 = vector.load %arg8[%c0_19, %c0_20] : memref<256x128xf32, #tpu.memory_space<vmem>>, vector<256x128xf32>
    tpu.vector_store %arg8[%c0_19, %c0_20], %27 {strides = array<i32>} : memref<256x128xf32, #tpu.memory_space<vmem>>, vector<256x128xf32>,
    return
  }
  func.func @transform_0(%arg0: i32) -> (i32, i32) {
    %c0_i32 = arith.constant 0 : i32
    %c0_i32_0 = arith.constant 0 : i32
    return %arg0, %c0_i32 : i32, i32
  }
  func.func @transform_1(%arg0: i32) -> (i32, i32) {
    %c0_i32 = arith.constant 0 : i32
    %c0_i32_0 = arith.constant 0 : i32
    %c0_i32_1 = arith.constant 0 : i32
    return %c0_i32, %c0_i32_0 : i32, i32
  }
  func.func @transform_2(%arg0: i32) -> (i32, i32) {
    %c0_i32 = arith.constant 0 : i32
    %c0_i32_0 = arith.constant 0 : i32
    %c0_i32_1 = arith.constant 0 : i32
    return %c0_i32, %c0_i32_0 : i32, i32
  }
  func.func @transform_3(%arg0: i32) -> (i32, i32) {
    %c0_i32 = arith.constant 0 : i32
    %c0_i32_0 = arith.constant 0 : i32
    %c0_i32_1 = arith.constant 0 : i32
    return %c0_i32, %c0_i32_0 : i32, i32
  }
  func.func @transform_4(%arg0: i32) -> (i32, i32) {
    %c0_i32 = arith.constant 0 : i32
    %c0_i32_0 = arith.constant 0 : i32
    %c0_i32_1 = arith.constant 0 : i32
    return %c0_i32, %c0_i32_0 : i32, i32
  }
  func.func @transform_5(%arg0: i32) -> (i32, i32) {
    %c0_i32 = arith.constant 0 : i32
    %c0_i32_0 = arith.constant 0 : i32
    %c0_i32_1 = arith.constant 0 : i32
    return %c0_i32, %c0_i32_0 : i32, i32
  }
  func.func @transform_6(%arg0: i32) -> (i32, i32) {
    %c0_i32 = arith.constant 0 : i32
    %c0_i32_0 = arith.constant 0 : i32
    %c0_i32_1 = arith.constant 0 : i32
    return %c0_i32, %c0_i32_0 : i32, i32
  }
  func.func @transform_7(%arg0: i32) -> (i32, i32) {
    %c0_i32 = arith.constant 0 : i32
    %c0_i32_0 = arith.constant 0 : i32
    return %arg0, %c0_i32 : i32, i32
  }
}

</mosaic_0001>

<llo_original>
// kernel: tpu_custom_call.1
$region0: #{tpu_custom_call.1}
  #allocation0 [shape = 'u32[]', space=smem, size = 0x4, offset = 0x4, fixed_abs, tag = 'smem constant byte address 0x4 - core index']
  #allocation1 [shape = 'u32[72,128]{1,0:T(1,128)}', space=vmem, size = 0x9000, scoped, tag = 'internal scratch']
  %s0 = inlined_call_operand.vmem [shape: bf16[512,32], index: 0, kind: input, shape index: {}]
  %s1 = inlined_call_operand.vmem [shape: bf16[32,32], index: 1, kind: input, shape index: {}]
  %s2 = inlined_call_operand.vmem [shape: f32[1,32], index: 2, kind: input, shape index: {}]
  %s3 = inlined_call_operand.vmem [shape: bf16[32,16], index: 3, kind: input, shape index: {}]
  %s4 = inlined_call_operand.vmem [shape: f32[1,16], index: 4, kind: input, shape index: {}]
  %s5 = inlined_call_operand.vmem [shape: bf16[16,128], index: 5, kind: input, shape index: {}]
  %s6 = inlined_call_operand.vmem [shape: f32[1,128], index: 6, kind: input, shape index: {}]
  %s7 = inlined_call_operand.hbm [shape: f32[512,128], index: 7, kind: output, shape index: {}]
  %s8 = sld [smem:[#allocation0]]
  $region61: #{tpu_custom_call.1} parent=0
    _
  %s10 = ssub.s32 1, %s8
  %s11 = scalar_select 0, %s10, %s8
  $region1: #{tpu_custom_call.1} parent=0
    #allocation2 [shape = 'u8[262144]{0}', space=vmem, size = 0x40000, scoped, tag = 'output window, operand 0']
    #allocation3 [shape = 's32[2]{0}', space=sflag, size = 0x8, scoped, tag = 'scoped memory for tpu_custom_call.1']
    %12 = vsyncpa [#allocation3], 0
    %s13 = scalar_lea.sflag [#allocation3], 1
    %14 = vsyncpa %s13, 0
    loop: start=0, step=1, limit=4
    $region2: #{tpu_custom_call.1} parent=1 // loop_pre_header
      _
    $region3: #{tpu_custom_call.1} parent=1 // loop_header
      %s16 = sphi 0, %s20
      %p17 = scmp.ge.s32.totalorder %s16, 4
      %s26 = sphi 0, %s28
      %s29 = sphi 0, %s26
      %s30 = sphi 0, %s29
      %s46 = sphi 0, %s30
      %s50 = sphi 0, %s50
      %s52 = sphi 0, %s50
      %s53 = sphi 0, %s52
      %s67 = sphi 0, %s53
      %s71 = sphi 0, %s71
      %s73 = sphi 0, %s71
      %s74 = sphi 0, %s73
      %s88 = sphi 0, %s74
      %s92 = sphi 0, %s92
      %s94 = sphi 0, %s92
      %s95 = sphi 0, %s94
      %s109 = sphi 0, %s95
      %s113 = sphi 0, %s113
      %s115 = sphi 0, %s113
      %s116 = sphi 0, %s115
      %s130 = sphi 0, %s116
      %s134 = sphi 0, %s134
      %s136 = sphi 0, %s134
      %s137 = sphi 0, %s136
      %s151 = sphi 0, %s137
      %s155 = sphi 0, %s155
      %s157 = sphi 0, %s155
      %s158 = sphi 0, %s157
      %s172 = sphi 0, %s158
      %s178 = sphi 0, %s180
      %s181 = sphi 0, %s178
      %s182 = sphi 0, %s181
      %s198 = sphi 0, %s182
    $region4: #{tpu_custom_call.1} parent=1 // loop_header_branch
      %19 = sbr.rel (%p17) target = $region8
    $region5: #{tpu_custom_call.1} parent=1 // loop_body
      %s21 = ssub.s32 %s16, 1
      %s22 = ssub.s32 %s16, 2
      %s23 = sadd.s32 %s16, 1
      %s24 = ssub.s32 %s16, %s23
      %p25 = scmp.eq.s32.totalorder %s24, 0
      %s27 = sadd.s32 %s26, 1
      %s28 = scalar_select %p25, %s26, %s27
      %p31 = pneg %p25
      %p32 = scmp.eq.s32.totalorder %s16, 1
      %p33 = por %p31, %p32
      %p34 = scmp.ne.s32.totalorder %s26, %s29
      %p35 = scmp.eq.s32.totalorder %s16, 0
      %p36 = por %p34, %p35
      %p37 = scmp.ne.s32.totalorder %s26, %s29
      %p38 = scmp.eq.s32.totalorder %s21, 1
      %p39 = por %p37, %p38
      %p40 = scmp.ne.s32.totalorder %s29, %s30
      %p41 = scmp.eq.s32.totalorder %s21, 0
      %p42 = por %p40, %p41
      %p43 = scmp.ne.s32.totalorder %s29, %s30
      %p44 = scmp.eq.s32.totalorder %s22, 1
      %p45 = por %p43, %p44
      %p47 = scmp.ne.s32.totalorder %s30, %s46
      %p48 = scmp.eq.s32.totalorder %s22, 0
      %p49 = por %p47, %p48
      %s51 = sadd.s32 %s50, 1
      %p54 = scmp.eq.s32.totalorder %s16, 1
      %p55 = scmp.ne.s32.totalorder %s50, %s52
      %p56 = scmp.eq.s32.totalorder %s16, 0
      %p57 = por %p55, %p56
      %p58 = scmp.ne.s32.totalorder %s50, %s52
      %p59 = scmp.eq.s32.totalorder %s21, 1
      %p60 = por %p58, %p59
      %p61 = scmp.ne.s32.totalorder %s52, %s53
      %p62 = scmp.eq.s32.totalorder %s21, 0
      %p63 = por %p61, %p62
      %p64 = scmp.ne.s32.totalorder %s52, %s53
      %p65 = scmp.eq.s32.totalorder %s22, 1
      %p66 = por %p64, %p65
      %p68 = scmp.ne.s32.totalorder %s53, %s67
      %p69 = scmp.eq.s32.totalorder %s22, 0
      %p70 = por %p68, %p69
      %s72 = sadd.s32 %s71, 1
      %p75 = scmp.eq.s32.totalorder %s16, 1
      %p76 = scmp.ne.s32.totalorder %s71, %s73
      %p77 = scmp.eq.s32.totalorder %s16, 0
      %p78 = por %p76, %p77
      %p79 = scmp.ne.s32.totalorder %s71, %s73
      %p80 = scmp.eq.s32.totalorder %s21, 1
      %p81 = por %p79, %p80
      %p82 = scmp.ne.s32.totalorder %s73, %s74
      %p83 = scmp.eq.s32.totalorder %s21, 0
      %p84 = por %p82, %p83
      %p85 = scmp.ne.s32.totalorder %s73, %s74
      %p86 = scmp.eq.s32.totalorder %s22, 1
      %p87 = por %p85, %p86
      %p89 = scmp.ne.s32.totalorder %s74, %s88
      %p90 = scmp.eq.s32.totalorder %s22, 0
      %p91 = por %p89, %p90
      %s93 = sadd.s32 %s92, 1
      %p96 = scmp.eq.s32.totalorder %s16, 1
      %p97 = scmp.ne.s32.totalorder %s92, %s94
      %p98 = scmp.eq.s32.totalorder %s16, 0
      %p99 = por %p97, %p98
      %p100 = scmp.ne.s32.totalorder %s92, %s94
      %p101 = scmp.eq.s32.totalorder %s21, 1
      %p102 = por %p100, %p101
      %p103 = scmp.ne.s32.totalorder %s94, %s95
      %p104 = scmp.eq.s32.totalorder %s21, 0
      %p105 = por %p103, %p104
      %p106 = scmp.ne.s32.totalorder %s94, %s95
      %p107 = scmp.eq.s32.totalorder %s22, 1
      %p108 = por %p106, %p107
      %p110 = scmp.ne.s32.totalorder %s95, %s109
      %p111 = scmp.eq.s32.totalorder %s22, 0
      %p112 = por %p110, %p111
      %s114 = sadd.s32 %s113, 1
      %p117 = scmp.eq.s32.totalorder %s16, 1
      %p118 = scmp.ne.s32.totalorder %s113, %s115
      %p119 = scmp.eq.s32.totalorder %s16, 0
      %p120 = por %p118, %p119
      %p121 = scmp.ne.s32.totalorder %s113, %s115
      %p122 = scmp.eq.s32.totalorder %s21, 1
      %p123 = por %p121, %p122
      %p124 = scmp.ne.s32.totalorder %s115, %s116
      %p125 = scmp.eq.s32.totalorder %s21, 0
      %p126 = por %p124, %p125
      %p127 = scmp.ne.s32.totalorder %s115, %s116
      %p128 = scmp.eq.s32.totalorder %s22, 1
      %p129 = por %p127, %p128
      %p131 = scmp.ne.s32.totalorder %s116, %s130
      %p132 = scmp.eq.s32.totalorder %s22, 0
      %p133 = por %p131, %p132
      %s135 = sadd.s32 %s134, 1
      %p138 = scmp.eq.s32.totalorder %s16, 1
      %p139 = scmp.ne.s32.totalorder %s134, %s136
      %p140 = scmp.eq.s32.totalorder %s16, 0
      %p141 = por %p139, %p140
      %p142 = scmp.ne.s32.totalorder %s134, %s136
      %p143 = scmp.eq.s32.totalorder %s21, 1
      %p144 = por %p142, %p143
      %p145 = scmp.ne.s32.totalorder %s136, %s137
      %p146 = scmp.eq.s32.totalorder %s21, 0
      %p147 = por %p145, %p146
      %p148 = scmp.ne.s32.totalorder %s136, %s137
      %p149 = scmp.eq.s32.totalorder %s22, 1
      %p150 = por %p148, %p149
      %p152 = scmp.ne.s32.totalorder %s137, %s151
      %p153 = scmp.eq.s32.totalorder %s22, 0
      %p154 = por %p152, %p153
      %s156 = sadd.s32 %s155, 1
      %p159 = scmp.eq.s32.totalorder %s16, 1
      %p160 = scmp.ne.s32.totalorder %s155, %s157
      %p161 = scmp.eq.s32.totalorder %s16, 0
      %p162 = por %p160, %p161
      %p163 = scmp.ne.s32.totalorder %s155, %s157
      %p164 = scmp.eq.s32.totalorder %s21, 1
      %p165 = por %p163, %p164
      %p166 = scmp.ne.s32.totalorder %s157, %s158
      %p167 = scmp.eq.s32.totalorder %s21, 0
      %p168 = por %p166, %p167
      %p169 = scmp.ne.s32.totalorder %s157, %s158
      %p170 = scmp.eq.s32.totalorder %s22, 1
      %p171 = por %p169, %p170
      %p173 = scmp.ne.s32.totalorder %s158, %s172
      %p174 = scmp.eq.s32.totalorder %s22, 0
      %p175 = por %p173, %p174
      %s176 = ssub.s32 %s16, %s23
      %p177 = scmp.eq.s32.totalorder %s176, 0
      %s179 = sadd.s32 %s178, 1
      %s180 = scalar_select %p177, %s178, %s179
      %p183 = pneg %p177
      %p184 = scmp.eq.s32.totalorder %s16, 1
      %p185 = por %p183, %p184
      %p186 = scmp.ne.s32.totalorder %s178, %s181
      %p187 = scmp.eq.s32.totalorder %s16, 0
      %p188 = por %p186, %p187
      %p189 = scmp.ne.s32.totalorder %s178, %s181
      %p190 = scmp.eq.s32.totalorder %s21, 1
      %p191 = por %p189, %p190
      %p192 = scmp.ne.s32.totalorder %s181, %s182
      %p193 = scmp.eq.s32.totalorder %s21, 0
      %p194 = por %p192, %p193
      %p195 = scmp.ne.s32.totalorder %s181, %s182
      %p196 = scmp.eq.s32.totalorder %s22, 1
      %p197 = por %p195, %p196
      %p199 = scmp.ne.s32.totalorder %s182, %s198
      %p200 = scmp.eq.s32.totalorder %s22, 0
      %p201 = por %p199, %p200
      %p202 = scmp.le.s32.totalorder 1, %s16
      %p203 = scmp.lt.s32.totalorder %s16, 3
      %p204 = pnand %p202, %p203
      %p205 = pneg %p204
      // Predicated region
      $region9: #{tpu_custom_call.1} parent=5 // pred_check
        _
      $region10: #{tpu_custom_call.1} parent=5 // pred_check_branch
        %207 = sbr.rel (%p204) target = $region12
      $region11: #{tpu_custom_call.1} parent=5 // pred_region
        %s208 = ssub.s32 %s16, 1
        // Predicated region
        $region13: #{tpu_custom_call.1} parent=11 // pred_check
          %p209 = pneg %p63
        $region14: #{tpu_custom_call.1} parent=11 // pred_check_branch
          %211 = sbr.rel (%p209) target = $region16
        $region15: #{tpu_custom_call.1} parent=11 // pred_region
          _
        $region16: #{tpu_custom_call.1} parent=11 // pred_fallthru
          _
        // Predicated region
        $region17: #{tpu_custom_call.1} parent=11 // pred_check
          %p212 = pneg %p84
        $region18: #{tpu_custom_call.1} parent=11 // pred_check_branch
          %214 = sbr.rel (%p212) target = $region20
        $region19: #{tpu_custom_call.1} parent=11 // pred_region
          _
        $region20: #{tpu_custom_call.1} parent=11 // pred_fallthru
          _
        // Predicated region
        $region21: #{tpu_custom_call.1} parent=11 // pred_check
          %p215 = pneg %p105
        $region22: #{tpu_custom_call.1} parent=11 // pred_check_branch
          %217 = sbr.rel (%p215) target = $region24
        $region23: #{tpu_custom_call.1} parent=11 // pred_region
          _
        $region24: #{tpu_custom_call.1} parent=11 // pred_fallthru
          _
        // Predicated region
        $region25: #{tpu_custom_call.1} parent=11 // pred_check
          %p218 = pneg %p126
        $region26: #{tpu_custom_call.1} parent=11 // pred_check_branch
          %220 = sbr.rel (%p218) target = $region28
        $region27: #{tpu_custom_call.1} parent=11 // pred_region
          _
        $region28: #{tpu_custom_call.1} parent=11 // pred_fallthru
          _
        // Predicated region
        $region29: #{tpu_custom_call.1} parent=11 // pred_check
          %p221 = pneg %p147
        $region30: #{tpu_custom_call.1} parent=11 // pred_check_branch
          %223 = sbr.rel (%p221) target = $region32
        $region31: #{tpu_custom_call.1} parent=11 // pred_region
          _
        $region32: #{tpu_custom_call.1} parent=11 // pred_fallthru
          _
        // Predicated region
        $region33: #{tpu_custom_call.1} parent=11 // pred_check
          %p224 = pneg %p168
        $region34: #{tpu_custom_call.1} parent=11 // pred_check_branch
          %226 = sbr.rel (%p224) target = $region36
        $region35: #{tpu_custom_call.1} parent=11 // pred_region
          _
        $region36: #{tpu_custom_call.1} parent=11 // pred_fallthru
          _
      $region12: #{tpu_custom_call.1} parent=5 // pred_fallthru
        _
      %p227 = scmp.lt.s32.totalorder %s16, 2
      // Predicated region
      $region37: #{tpu_custom_call.1} parent=5 // pred_check
        %p228 = pneg %p227
      $region38: #{tpu_custom_call.1} parent=5 // pred_check_branch
        %230 = sbr.rel (%p228) target = $region40
      $region39: #{tpu_custom_call.1} parent=5 // pred_region
        // Predicated region
        $region41: #{tpu_custom_call.1} parent=39 // pred_check
          %p231 = pneg %p36
        $region42: #{tpu_custom_call.1} parent=39 // pred_check_branch
          %233 = sbr.rel (%p231) target = $region44
        $region43: #{tpu_custom_call.1} parent=39 // pred_region
          %s234 = smul.u32 32, %s16
          %p235 = scmp.lt.s32.totalorder %s234, 63
          %s236 = scalar_select %p235, %s234, 63
          %s237 = smul.addr %s236, 4
          %s238 = scalar_lea.vmem %s0, %s237
          %s239 = smul.u32 32, %s16
        $region44: #{tpu_custom_call.1} parent=39 // pred_fallthru
          _
      $region40: #{tpu_custom_call.1} parent=5 // pred_fallthru
        _
      %p240 = scmp.le.s32.totalorder 1, %s16
      %p241 = scmp.lt.s32.totalorder %s16, 3
      %p242 = pnand %p240, %p241
      %p243 = pneg %p242
      // Predicated region
      $region45: #{tpu_custom_call.1} parent=5 // pred_check
        _
      $region46: #{tpu_custom_call.1} parent=5 // pred_check_branch
        %245 = sbr.rel (%p242) target = $region48
      $region47: #{tpu_custom_call.1} parent=5 // pred_region
        %s246 = ssub.s32 %s16, 1
        %s247 = smul.u32 32, %s21
        %p248 = scmp.lt.s32.totalorder %s247, 63
        %s249 = scalar_select %p248, %s247, 63
        %s250 = smul.addr %s249, 4
        %s251 = scalar_lea.vmem %s0, %s250
        %p252 = pneg %p42
        %p253 = pneg %p39
        %p254 = pneg %p63
        %p255 = pneg %p60
        %p256 = pneg %p84
        %p257 = pneg %p81
        %p258 = pneg %p105
        %p259 = pneg %p102
        %p260 = pneg %p126
        %p261 = pneg %p123
        %p262 = pneg %p147
        %p263 = pneg %p144
        %p264 = pneg %p168
        %p265 = pneg %p165
        %p266 = pneg %p194
        %p267 = pneg %p191
        %s268 = sand.u32 %s181, 1
        %s269 = scalar_lea.sflag [#allocation3], %s268
        %s270 = sand.u32 %s181, 1
        %s271 = smul.addr %s270, 256
        %s272 = scalar_lea.vmem [#allocation2], %s271
        %s273 = smul.u32 32, %s21
        %p274 = scmp.lt.s32.totalorder %s273, 63
        %s275 = scalar_select %p274, %s273, 63
        %s276 = smul.addr %s275, 4
        %s277 = scalar_lea.vmem %s0, %s276
        %s278 = smul.u32 32, %s21
        %s279 = smul.u32 32, %s21
        %v281 = vld [vmem:[%s277] sm:$0xf]
        %v282 = vld [vmem:[%s277 + $0x4] sm:$0xf]
        %v283 = vld [vmem:[%s277 + $0x8] sm:$0xf]
        %v284 = vld [vmem:[%s277 + $0xc] sm:$0xf]
        %v285 = vld [vmem:[%s277 + $0x10] sm:$0xf]
        %v286 = vld [vmem:[%s277 + $0x14] sm:$0xf]
        %v287 = vld [vmem:[%s277 + $0x18] sm:$0xf]
        %v288 = vld [vmem:[%s277 + $0x1c] sm:$0xf]
        %v289 = vld [vmem:[%s277 + $0x20] sm:$0xf]
        %v290 = vld [vmem:[%s277 + $0x24] sm:$0xf]
        %v291 = vld [vmem:[%s277 + $0x28] sm:$0xf]
        %v292 = vld [vmem:[%s277 + $0x2c] sm:$0xf]
        %v293 = vld [vmem:[%s277 + $0x30] sm:$0xf]
        %v294 = vld [vmem:[%s277 + $0x34] sm:$0xf]
        %v295 = vld [vmem:[%s277 + $0x38] sm:$0xf]
        %v296 = vld [vmem:[%s277 + $0x3c] sm:$0xf]
        %v297 = vld [vmem:[%s277 + $0x40] sm:$0xf]
        %v298 = vld [vmem:[%s277 + $0x44] sm:$0xf]
        %v299 = vld [vmem:[%s277 + $0x48] sm:$0xf]
        %v300 = vld [vmem:[%s277 + $0x4c] sm:$0xf]
        %v301 = vld [vmem:[%s277 + $0x50] sm:$0xf]
        %v302 = vld [vmem:[%s277 + $0x54] sm:$0xf]
        %v303 = vld [vmem:[%s277 + $0x58] sm:$0xf]
        %v304 = vld [vmem:[%s277 + $0x5c] sm:$0xf]
        %v305 = vld [vmem:[%s277 + $0x60] sm:$0xf]
        %v306 = vld [vmem:[%s277 + $0x64] sm:$0xf]
        %v307 = vld [vmem:[%s277 + $0x68] sm:$0xf]
        %v308 = vld [vmem:[%s277 + $0x6c] sm:$0xf]
        %v309 = vld [vmem:[%s277 + $0x70] sm:$0xf]
        %v310 = vld [vmem:[%s277 + $0x74] sm:$0xf]
        %v311 = vld [vmem:[%s277 + $0x78] sm:$0xf]
        %v312 = vld [vmem:[%s277 + $0x7c] sm:$0xf]
        %v313 = vld [vmem:[%s1] sm:$0xf]
        %v314 = vld [vmem:[%s1 + $0x4] sm:$0xf]
        %v315 = vld [vmem:[%s1 + $0x8] sm:$0xf]
        %v316 = vld [vmem:[%s1 + $0xc] sm:$0xf]
        %v317 = vld [vmem:[%s2] sm:$0x1]
        %v319 = vperm.slane %v317, 0
        %v353 = vunpack.c.l.b16 %v281
        %v354 = vunpack.c.l.b16 %v282
        %v355 = vunpack.c.l.b16 %v283
        %v356 = vunpack.c.l.b16 %v284
        %v357 = vunpack.c.l.b16 %v285
        %v358 = vunpack.c.l.b16 %v286
        %v359 = vunpack.c.l.b16 %v287
        %v360 = vunpack.c.l.b16 %v288
        %v361 = vunpack.c.l.b16 %v289
        %v362 = vunpack.c.l.b16 %v290
        %v363 = vunpack.c.l.b16 %v291
        %v364 = vunpack.c.l.b16 %v292
        %v365 = vunpack.c.l.b16 %v293
        %v366 = vunpack.c.l.b16 %v294
        %v367 = vunpack.c.l.b16 %v295
        %v368 = vunpack.c.l.b16 %v296
        %v369 = vunpack.c.l.b16 %v297
        %v370 = vunpack.c.l.b16 %v298
        %v371 = vunpack.c.l.b16 %v299
        %v372 = vunpack.c.l.b16 %v300
        %v373 = vunpack.c.l.b16 %v301
        %v374 = vunpack.c.l.b16 %v302
        %v375 = vunpack.c.l.b16 %v303
        %v376 = vunpack.c.l.b16 %v304
        %v377 = vunpack.c.l.b16 %v305
        %v378 = vunpack.c.l.b16 %v306
        %v379 = vunpack.c.l.b16 %v307
        %v380 = vunpack.c.l.b16 %v308
        %v381 = vunpack.c.l.b16 %v309
        %v382 = vunpack.c.l.b16 %v310
        %v383 = vunpack.c.l.b16 %v311
        %v384 = vunpack.c.l.b16 %v312
        %v385 = vpack.c.b16 %v354, %v353
        %v386 = vpack.c.b16 %v356, %v355
        %v387 = vpack.c.b16 %v358, %v357
        %v388 = vpack.c.b16 %v360, %v359
        %v389 = vpack.c.b16 %v362, %v361
        %v390 = vpack.c.b16 %v364, %v363
        %v391 = vpack.c.b16 %v366, %v365
        %v392 = vpack.c.b16 %v368, %v367
        %v393 = vpack.c.b16 %v370, %v369
        %v394 = vpack.c.b16 %v372, %v371
        %v395 = vpack.c.b16 %v374, %v373
        %v396 = vpack.c.b16 %v376, %v375
        %v397 = vpack.c.b16 %v378, %v377
        %v398 = vpack.c.b16 %v380, %v379
        %v399 = vpack.c.b16 %v382, %v381
        %v400 = vpack.c.b16 %v384, %v383
        %v405 = vunpack.c.l.b16 %v313
        %v406 = vunpack.c.l.b16 %v314
        %v407 = vunpack.c.l.b16 %v315
        %v408 = vunpack.c.l.b16 %v316
        %v409 = vpack.c.b16 %v406, %v405
        %v410 = vpack.c.b16 %v408, %v407
        %vm413 = vcmask 261120
        %v415 = vsel %vm413, %v385, 0
        %v418 = vsel %vm413, %v386, 0
        %v421 = vsel %vm413, %v387, 0
        %v424 = vsel %vm413, %v388, 0
        %v427 = vsel %vm413, %v389, 0
        %v430 = vsel %vm413, %v390, 0
        %v433 = vsel %vm413, %v391, 0
        %v436 = vsel %vm413, %v392, 0
        %v439 = vsel %vm413, %v393, 0
        %v442 = vsel %vm413, %v394, 0
        %v445 = vsel %vm413, %v395, 0
        %v448 = vsel %vm413, %v396, 0
        %v451 = vsel %vm413, %v397, 0
        %v454 = vsel %vm413, %v398, 0
        %v457 = vsel %vm413, %v399, 0
        %v460 = vsel %vm413, %v400, 0
        %462 = vmatpush.bf16.msra.mxu0 0
        %463 = vmatpush.bf16.msra.mxu0 0
        %464 = vmatpush.bf16.msra.mxu0 0
        %465 = vmatpush.bf16.msra.mxu0 0
        %466 = vmatpush.bf16.msra.mxu0 0
        %467 = vmatpush.bf16.msra.mxu0 0
        %468 = vmatpush.bf16.msra.mxu0 %v410
        %469 = vmatpush.bf16.msra.mxu0 %v409
        %470 = vmatmul.bf16.gmra.mxu0 %v415
        %v471 = vpop.f32.mrf.mxu0
        %v472 = vadd.f32 %v319, %v471
        %v473 = vpop.f32.mrf.mxu0
        %v474 = vadd.f32 %v319, %v473
        %475 = vmatmul.bf16.gmra.mxu0 %v418
        %v476 = vpop.f32.mrf.mxu0
        %v477 = vadd.f32 %v319, %v476
        %v478 = vpop.f32.mrf.mxu0
        %v479 = vadd.f32 %v319, %v478
        %480 = vmatmul.bf16.gmra.mxu0 %v421
        %v481 = vpop.f32.mrf.mxu0
        %v482 = vadd.f32 %v319, %v481
        %v483 = vpop.f32.mrf.mxu0
        %v484 = vadd.f32 %v319, %v483
        %485 = vmatmul.bf16.gmra.mxu0 %v424
        %v486 = vpop.f32.mrf.mxu0
        %v487 = vadd.f32 %v319, %v486
        %v488 = vpop.f32.mrf.mxu0
        %v489 = vadd.f32 %v319, %v488
        %490 = vmatmul.bf16.gmra.mxu0 %v427
        %v491 = vpop.f32.mrf.mxu0
        %v492 = vadd.f32 %v319, %v491
        %v493 = vpop.f32.mrf.mxu0
        %v494 = vadd.f32 %v319, %v493
        %495 = vmatmul.bf16.gmra.mxu0 %v430
        %v496 = vpop.f32.mrf.mxu0
        %v497 = vadd.f32 %v319, %v496
        %v498 = vpop.f32.mrf.mxu0
        %v499 = vadd.f32 %v319, %v498
        %500 = vmatmul.bf16.gmra.mxu0 %v433
        %v501 = vpop.f32.mrf.mxu0
        %v502 = vadd.f32 %v319, %v501
        %v503 = vpop.f32.mrf.mxu0
        %v504 = vadd.f32 %v319, %v503
        %505 = vmatmul.bf16.gmra.mxu0 %v436
        %v506 = vpop.f32.mrf.mxu0
        %v507 = vadd.f32 %v319, %v506
        %v508 = vpop.f32.mrf.mxu0
        %v509 = vadd.f32 %v319, %v508
        %510 = vmatmul.bf16.gmra.mxu0 %v439
        %v511 = vpop.f32.mrf.mxu0
        %v512 = vadd.f32 %v319, %v511
        %v513 = vpop.f32.mrf.mxu0
        %v514 = vadd.f32 %v319, %v513
        %515 = vmatmul.bf16.gmra.mxu0 %v442
        %v516 = vpop.f32.mrf.mxu0
        %v517 = vadd.f32 %v319, %v516
        %v518 = vpop.f32.mrf.mxu0
        %v519 = vadd.f32 %v319, %v518
        %520 = vmatmul.bf16.gmra.mxu0 %v445
        %v521 = vpop.f32.mrf.mxu0
        %v522 = vadd.f32 %v319, %v521
        %v523 = vpop.f32.mrf.mxu0
        %v524 = vadd.f32 %v319, %v523
        %525 = vmatmul.bf16.gmra.mxu0 %v448
        %v526 = vpop.f32.mrf.mxu0
        %v527 = vadd.f32 %v319, %v526
        %v528 = vpop.f32.mrf.mxu0
        %v529 = vadd.f32 %v319, %v528
        %530 = vmatmul.bf16.gmra.mxu0 %v451
        %v531 = vpop.f32.mrf.mxu0
        %v532 = vadd.f32 %v319, %v531
        %v533 = vpop.f32.mrf.mxu0
        %v534 = vadd.f32 %v319, %v533
        %535 = vmatmul.bf16.gmra.mxu0 %v454
        %v536 = vpop.f32.mrf.mxu0
        %v537 = vadd.f32 %v319, %v536
        %v538 = vpop.f32.mrf.mxu0
        %v539 = vadd.f32 %v319, %v538
        %540 = vmatmul.bf16.gmra.mxu0 %v457
        %v541 = vpop.f32.mrf.mxu0
        %v542 = vadd.f32 %v319, %v541
        %v543 = vpop.f32.mrf.mxu0
        %v544 = vadd.f32 %v319, %v543
        %545 = vmatmul.bf16.gmra.mxu0 %v460
        %v546 = vpop.f32.mrf.mxu0
        %v547 = vadd.f32 %v319, %v546
        %v548 = vpop.f32.mrf.mxu0
        %v549 = vadd.f32 %v319, %v548
        %550 = vdwg.mxu0
        %v551 = vmax.f32 %v472, 0.0
        %v552 = vmax.f32 %v474, 0.0
        %v553 = vmax.f32 %v477, 0.0
        %v554 = vmax.f32 %v479, 0.0
        %v555 = vmax.f32 %v482, 0.0
        %v556 = vmax.f32 %v484, 0.0
        %v557 = vmax.f32 %v487, 0.0
        %v558 = vmax.f32 %v489, 0.0
        %v559 = vmax.f32 %v492, 0.0
        %v560 = vmax.f32 %v494, 0.0
        %v561 = vmax.f32 %v497, 0.0
        %v562 = vmax.f32 %v499, 0.0
        %v563 = vmax.f32 %v502, 0.0
        %v564 = vmax.f32 %v504, 0.0
        %v565 = vmax.f32 %v507, 0.0
        %v566 = vmax.f32 %v509, 0.0
        %v567 = vmax.f32 %v512, 0.0
        %v568 = vmax.f32 %v514, 0.0
        %v569 = vmax.f32 %v517, 0.0
        %v570 = vmax.f32 %v519, 0.0
        %v571 = vmax.f32 %v522, 0.0
        %v572 = vmax.f32 %v524, 0.0
        %v573 = vmax.f32 %v527, 0.0
        %v574 = vmax.f32 %v529, 0.0
        %v575 = vmax.f32 %v532, 0.0
        %v576 = vmax.f32 %v534, 0.0
        %v577 = vmax.f32 %v537, 0.0
        %v578 = vmax.f32 %v539, 0.0
        %v579 = vmax.f32 %v542, 0.0
        %v580 = vmax.f32 %v544, 0.0
        %v581 = vmax.f32 %v547, 0.0
        %v582 = vmax.f32 %v549, 0.0
        %v583 = vpack.c.bf16 %v552, %v551
        %v584 = vpack.c.bf16 %v554, %v553
        %v585 = vpack.c.bf16 %v556, %v555
        %v586 = vpack.c.bf16 %v558, %v557
        %v587 = vpack.c.bf16 %v560, %v559
        %v588 = vpack.c.bf16 %v562, %v561
        %v589 = vpack.c.bf16 %v564, %v563
        %v590 = vpack.c.bf16 %v566, %v565
        %v591 = vpack.c.bf16 %v568, %v567
        %v592 = vpack.c.bf16 %v570, %v569
        %v593 = vpack.c.bf16 %v572, %v571
        %v594 = vpack.c.bf16 %v574, %v573
        %v595 = vpack.c.bf16 %v576, %v575
        %v596 = vpack.c.bf16 %v578, %v577
        %v597 = vpack.c.bf16 %v580, %v579
        %v598 = vpack.c.bf16 %v582, %v581
        %v599 = vld [vmem:[%s3] sm:$0xf]
        %v600 = vld [vmem:[%s3 + $0x4] sm:$0xf]
        %v601 = vld [vmem:[%s3 + $0x8] sm:$0xf]
        %v602 = vld [vmem:[%s3 + $0xc] sm:$0xf]
        %v603 = vld [vmem:[%s4] sm:$0x1]
        %v605 = vperm.slane %v603, 0
        %v611 = vunpack.c.l.b16 %v599
        %v612 = vunpack.c.l.b16 %v600
        %v613 = vunpack.c.l.b16 %v601
        %v614 = vunpack.c.l.b16 %v602
        %v615 = vpack.c.b16 %v612, %v611
        %v616 = vpack.c.b16 %v614, %v613
        %v620 = vsel %vm413, %v583, 0
        %v623 = vsel %vm413, %v584, 0
        %v626 = vsel %vm413, %v585, 0
        %v629 = vsel %vm413, %v586, 0
        %v632 = vsel %vm413, %v587, 0
        %v635 = vsel %vm413, %v588, 0
        %v638 = vsel %vm413, %v589, 0
        %v641 = vsel %vm413, %v590, 0
        %v644 = vsel %vm413, %v591, 0
        %v647 = vsel %vm413, %v592, 0
        %v650 = vsel %vm413, %v593, 0
        %v653 = vsel %vm413, %v594, 0
        %v656 = vsel %vm413, %v595, 0
        %v659 = vsel %vm413, %v596, 0
        %v662 = vsel %vm413, %v597, 0
        %v665 = vsel %vm413, %v598, 0
        %667 = vmatpush.bf16.msra.mxu0 0
        %668 = vmatpush.bf16.msra.mxu0 0
        %669 = vmatpush.bf16.msra.mxu0 0
        %670 = vmatpush.bf16.msra.mxu0 0
        %671 = vmatpush.bf16.msra.mxu0 0
        %672 = vmatpush.bf16.msra.mxu0 0
        %673 = vmatpush.bf16.msra.mxu0 %v616
        %674 = vmatpush.bf16.msra.mxu0 %v615
        %675 = vmatmul.bf16.gmra.mxu0 %v620
        %v676 = vpop.f32.mrf.mxu0
        %v677 = vadd.f32 %v605, %v676
        %v678 = vpop.f32.mrf.mxu0
        %v679 = vadd.f32 %v605, %v678
        %680 = vmatmul.bf16.gmra.mxu0 %v623
        %v681 = vpop.f32.mrf.mxu0
        %v682 = vadd.f32 %v605, %v681
        %v683 = vpop.f32.mrf.mxu0
        %v684 = vadd.f32 %v605, %v683
        %685 = vmatmul.bf16.gmra.mxu0 %v626
        %v686 = vpop.f32.mrf.mxu0
        %v687 = vadd.f32 %v605, %v686
        %v688 = vpop.f32.mrf.mxu0
        %v689 = vadd.f32 %v605, %v688
        %690 = vmatmul.bf16.gmra.mxu0 %v629
        %v691 = vpop.f32.mrf.mxu0
        %v692 = vadd.f32 %v605, %v691
        %v693 = vpop.f32.mrf.mxu0
        %v694 = vadd.f32 %v605, %v693
        %695 = vmatmul.bf16.gmra.mxu0 %v632
        %v696 = vpop.f32.mrf.mxu0
        %v697 = vadd.f32 %v605, %v696
        %v698 = vpop.f32.mrf.mxu0
        %v699 = vadd.f32 %v605, %v698
        %700 = vmatmul.bf16.gmra.mxu0 %v635
        %v701 = vpop.f32.mrf.mxu0
        %v702 = vadd.f32 %v605, %v701
        %v703 = vpop.f32.mrf.mxu0
        %v704 = vadd.f32 %v605, %v703
        %705 = vmatmul.bf16.gmra.mxu0 %v638
        %v706 = vpop.f32.mrf.mxu0
        %v707 = vadd.f32 %v605, %v706
        %v708 = vpop.f32.mrf.mxu0
        %v709 = vadd.f32 %v605, %v708
        %710 = vmatmul.bf16.gmra.mxu0 %v641
        %v711 = vpop.f32.mrf.mxu0
        %v712 = vadd.f32 %v605, %v711
        %v713 = vpop.f32.mrf.mxu0
        %v714 = vadd.f32 %v605, %v713
        %715 = vmatmul.bf16.gmra.mxu0 %v644
        %v716 = vpop.f32.mrf.mxu0
        %v717 = vadd.f32 %v605, %v716
        %v718 = vpop.f32.mrf.mxu0
        %v719 = vadd.f32 %v605, %v718
        %720 = vmatmul.bf16.gmra.mxu0 %v647
        %v721 = vpop.f32.mrf.mxu0
        %v722 = vadd.f32 %v605, %v721
        %v723 = vpop.f32.mrf.mxu0
        %v724 = vadd.f32 %v605, %v723
        %725 = vmatmul.bf16.gmra.mxu0 %v650
        %v726 = vpop.f32.mrf.mxu0
        %v727 = vadd.f32 %v605, %v726
        %v728 = vpop.f32.mrf.mxu0
        %v729 = vadd.f32 %v605, %v728
        %730 = vmatmul.bf16.gmra.mxu0 %v653
        %v731 = vpop.f32.mrf.mxu0
        %v732 = vadd.f32 %v605, %v731
        %v733 = vpop.f32.mrf.mxu0
        %v734 = vadd.f32 %v605, %v733
        %735 = vmatmul.bf16.gmra.mxu0 %v656
        %v736 = vpop.f32.mrf.mxu0
        %v737 = vadd.f32 %v605, %v736
        %v738 = vpop.f32.mrf.mxu0
        %v739 = vadd.f32 %v605, %v738
        %740 = vmatmul.bf16.gmra.mxu0 %v659
        %v741 = vpop.f32.mrf.mxu0
        %v742 = vadd.f32 %v605, %v741
        %v743 = vpop.f32.mrf.mxu0
        %v744 = vadd.f32 %v605, %v743
        %745 = vmatmul.bf16.gmra.mxu0 %v662
        %v746 = vpop.f32.mrf.mxu0
        %v747 = vadd.f32 %v605, %v746
        %v748 = vpop.f32.mrf.mxu0
        %v749 = vadd.f32 %v605, %v748
        %750 = vmatmul.bf16.gmra.mxu0 %v665
        %v751 = vpop.f32.mrf.mxu0
        %v752 = vadd.f32 %v605, %v751
        %v753 = vpop.f32.mrf.mxu0
        %v754 = vadd.f32 %v605, %v753
        %755 = vdwg.mxu0
        %v756 = vmax.f32 %v677, 0.0
        %v757 = vmax.f32 %v679, 0.0
        %v758 = vmax.f32 %v682, 0.0
        %v759 = vmax.f32 %v684, 0.0
        %v760 = vmax.f32 %v687, 0.0
        %v761 = vmax.f32 %v689, 0.0
        %v762 = vmax.f32 %v692, 0.0
        %v763 = vmax.f32 %v694, 0.0
        %v764 = vmax.f32 %v697, 0.0
        %v765 = vmax.f32 %v699, 0.0
        %v766 = vmax.f32 %v702, 0.0
        %v767 = vmax.f32 %v704, 0.0
        %v768 = vmax.f32 %v707, 0.0
        %v769 = vmax.f32 %v709, 0.0
        %v770 = vmax.f32 %v712, 0.0
        %v771 = vmax.f32 %v714, 0.0
        %v772 = vmax.f32 %v717, 0.0
        %v773 = vmax.f32 %v719, 0.0
        %v774 = vmax.f32 %v722, 0.0
        %v775 = vmax.f32 %v724, 0.0
        %v776 = vmax.f32 %v727, 0.0
        %v777 = vmax.f32 %v729, 0.0
        %v778 = vmax.f32 %v732, 0.0
        %v779 = vmax.f32 %v734, 0.0
        %v780 = vmax.f32 %v737, 0.0
        %v781 = vmax.f32 %v739, 0.0
        %v782 = vmax.f32 %v742, 0.0
        %v783 = vmax.f32 %v744, 0.0
        %v784 = vmax.f32 %v747, 0.0
        %v785 = vmax.f32 %v749, 0.0
        %v786 = vmax.f32 %v752, 0.0
        %v787 = vmax.f32 %v754, 0.0
        %v788 = vpack.c.bf16 %v757, %v756
        %v789 = vpack.c.bf16 %v759, %v758
        %v790 = vpack.c.bf16 %v761, %v760
        %v791 = vpack.c.bf16 %v763, %v762
        %v792 = vpack.c.bf16 %v765, %v764
        %v793 = vpack.c.bf16 %v767, %v766
        %v794 = vpack.c.bf16 %v769, %v768
        %v795 = vpack.c.bf16 %v771, %v770
        %v796 = vpack.c.bf16 %v773, %v772
        %v797 = vpack.c.bf16 %v775, %v774
        %v798 = vpack.c.bf16 %v777, %v776
        %v799 = vpack.c.bf16 %v779, %v778
        %v800 = vpack.c.bf16 %v781, %v780
        %v801 = vpack.c.bf16 %v783, %v782
        %v802 = vpack.c.bf16 %v785, %v784
        %v803 = vpack.c.bf16 %v787, %v786
        %v804 = vld [vmem:[%s5] sm:$0xf]
        %v805 = vld [vmem:[%s5 + $0x4] sm:$0xf]
        %v806 = vld [vmem:[%s6] sm:$0x1]
        %v808 = vperm.slane %v806, 0
        %v812 = vunpack.c.l.b16 %v804
        %v813 = vunpack.c.l.b16 %v805
        %v814 = vpack.c.b16 %v813, %v812
        %vm816 = vcmask 130048
        %v818 = vsel %vm816, %v788, 0
        %v821 = vsel %vm816, %v789, 0
        %v824 = vsel %vm816, %v790, 0
        %v827 = vsel %vm816, %v791, 0
        %v830 = vsel %vm816, %v792, 0
        %v833 = vsel %vm816, %v793, 0
        %v836 = vsel %vm816, %v794, 0
        %v839 = vsel %vm816, %v795, 0
        %v842 = vsel %vm816, %v796, 0
        %v845 = vsel %vm816, %v797, 0
        %v848 = vsel %vm816, %v798, 0
        %v851 = vsel %vm816, %v799, 0
        %v854 = vsel %vm816, %v800, 0
        %v857 = vsel %vm816, %v801, 0
        %v860 = vsel %vm816, %v802, 0
        %v863 = vsel %vm816, %v803, 0
        %865 = vmatpush.bf16.msra.mxu0 0
        %866 = vmatpush.bf16.msra.mxu0 0
        %867 = vmatpush.bf16.msra.mxu0 0
        %868 = vmatpush.bf16.msra.mxu0 0
        %869 = vmatpush.bf16.msra.mxu0 0
        %870 = vmatpush.bf16.msra.mxu0 0
        %871 = vmatpush.bf16.msra.mxu0 0
        %872 = vmatpush.bf16.msra.mxu0 %v814
        %873 = vmatmul.bf16.gmra.mxu0 %v818
        %v874 = vpop.f32.mrf.mxu0
        %v875 = vadd.f32 %v808, %v874
        %v876 = vpop.f32.mrf.mxu0
        %v877 = vadd.f32 %v808, %v876
        %878 = vmatmul.bf16.gmra.mxu0 %v821
        %v879 = vpop.f32.mrf.mxu0
        %v880 = vadd.f32 %v808, %v879
        %v881 = vpop.f32.mrf.mxu0
        %v882 = vadd.f32 %v808, %v881
        %883 = vmatmul.bf16.gmra.mxu0 %v824
        %v884 = vpop.f32.mrf.mxu0
        %v885 = vadd.f32 %v808, %v884
        %v886 = vpop.f32.mrf.mxu0
        %v887 = vadd.f32 %v808, %v886
        %888 = vmatmul.bf16.gmra.mxu0 %v827
        %v889 = vpop.f32.mrf.mxu0
        %v890 = vadd.f32 %v808, %v889
        %v891 = vpop.f32.mrf.mxu0
        %v892 = vadd.f32 %v808, %v891
        %893 = vmatmul.bf16.gmra.mxu0 %v830
        %v894 = vpop.f32.mrf.mxu0
        %v895 = vadd.f32 %v808, %v894
        %v896 = vpop.f32.mrf.mxu0
        %v897 = vadd.f32 %v808, %v896
        %898 = vmatmul.bf16.gmra.mxu0 %v833
        %v899 = vpop.f32.mrf.mxu0
        %v900 = vadd.f32 %v808, %v899
        %v901 = vpop.f32.mrf.mxu0
        %v902 = vadd.f32 %v808, %v901
        %903 = vmatmul.bf16.gmra.mxu0 %v836
        %v904 = vpop.f32.mrf.mxu0
        %v905 = vadd.f32 %v808, %v904
        %v906 = vpop.f32.mrf.mxu0
        %v907 = vadd.f32 %v808, %v906
        %908 = vmatmul.bf16.gmra.mxu0 %v839
        %v909 = vpop.f32.mrf.mxu0
        %v910 = vadd.f32 %v808, %v909
        %v911 = vpop.f32.mrf.mxu0
        %v912 = vadd.f32 %v808, %v911
        %913 = vmatmul.bf16.gmra.mxu0 %v842
        %v914 = vpop.f32.mrf.mxu0
        %v915 = vadd.f32 %v808, %v914
        %v916 = vpop.f32.mrf.mxu0
        %v917 = vadd.f32 %v808, %v916
        %918 = vmatmul.bf16.gmra.mxu0 %v845
        %v919 = vpop.f32.mrf.mxu0
        %v920 = vadd.f32 %v808, %v919
        %v921 = vpop.f32.mrf.mxu0
        %v922 = vadd.f32 %v808, %v921
        %923 = vmatmul.bf16.gmra.mxu0 %v848
        %v924 = vpop.f32.mrf.mxu0
        %v925 = vadd.f32 %v808, %v924
        %v926 = vpop.f32.mrf.mxu0
        %v927 = vadd.f32 %v808, %v926
        %928 = vmatmul.bf16.gmra.mxu0 %v851
        %v929 = vpop.f32.mrf.mxu0
        %v930 = vadd.f32 %v808, %v929
        %v931 = vpop.f32.mrf.mxu0
        %v932 = vadd.f32 %v808, %v931
        %933 = vmatmul.bf16.gmra.mxu0 %v854
        %v934 = vpop.f32.mrf.mxu0
        %v935 = vadd.f32 %v808, %v934
        %v936 = vpop.f32.mrf.mxu0
        %v937 = vadd.f32 %v808, %v936
        %938 = vmatmul.bf16.gmra.mxu0 %v857
        %v939 = vpop.f32.mrf.mxu0
        %v940 = vadd.f32 %v808, %v939
        %v941 = vpop.f32.mrf.mxu0
        %v942 = vadd.f32 %v808, %v941
        %943 = vmatmul.bf16.gmra.mxu0 %v860
        %v944 = vpop.f32.mrf.mxu0
        %v945 = vadd.f32 %v808, %v944
        %v946 = vpop.f32.mrf.mxu0
        %v947 = vadd.f32 %v808, %v946
        %948 = vmatmul.bf16.gmra.mxu0 %v863
        %v949 = vpop.f32.mrf.mxu0
        %v950 = vadd.f32 %v808, %v949
        %v951 = vpop.f32.mrf.mxu0
        %v952 = vadd.f32 %v808, %v951
        %953 = vdwg.mxu0
        %v954 = vsub.f32 0.0, %v875
        %v955 = vsub.f32 0.0, %v877
        %v956 = vsub.f32 0.0, %v880
        %v957 = vsub.f32 0.0, %v882
        %v958 = vsub.f32 0.0, %v885
        %v959 = vsub.f32 0.0, %v887
        %v960 = vsub.f32 0.0, %v890
        %v961 = vsub.f32 0.0, %v892
        %v962 = vsub.f32 0.0, %v895
        %v963 = vsub.f32 0.0, %v897
        %v964 = vsub.f32 0.0, %v900
        %v965 = vsub.f32 0.0, %v902
        %v966 = vsub.f32 0.0, %v905
        %v967 = vsub.f32 0.0, %v907
        %v968 = vsub.f32 0.0, %v910
        %v969 = vsub.f32 0.0, %v912
        %v970 = vsub.f32 0.0, %v915
        %v971 = vsub.f32 0.0, %v917
        %v972 = vsub.f32 0.0, %v920
        %v973 = vsub.f32 0.0, %v922
        %v974 = vsub.f32 0.0, %v925
        %v975 = vsub.f32 0.0, %v927
        %v976 = vsub.f32 0.0, %v930
        %v977 = vsub.f32 0.0, %v932
        %v978 = vsub.f32 0.0, %v935
        %v979 = vsub.f32 0.0, %v937
        %v980 = vsub.f32 0.0, %v940
        %v981 = vsub.f32 0.0, %v942
        %v982 = vsub.f32 0.0, %v945
        %v983 = vsub.f32 0.0, %v947
        %v984 = vsub.f32 0.0, %v950
        %v985 = vsub.f32 0.0, %v952
        %v986 = vmul.f32 %v954, 1.442695
        %v987 = vpow.pop %v986
        %v988 = vmul.f32 %v955, 1.442695
        %v989 = vpow.pop %v988
        %v990 = vmul.f32 %v956, 1.442695
        %v991 = vpow.pop %v990
        %v992 = vmul.f32 %v957, 1.442695
        %v993 = vpow.pop %v992
        %v994 = vmul.f32 %v958, 1.442695
        %v995 = vpow.pop %v994
        %v996 = vmul.f32 %v959, 1.442695
        %v997 = vpow.pop %v996
        %v998 = vmul.f32 %v960, 1.442695
        %v999 = vpow.pop %v998
        %v1000 = vmul.f32 %v961, 1.442695
        %v1001 = vpow.pop %v1000
        %v1002 = vmul.f32 %v962, 1.442695
        %v1003 = vpow.pop %v1002
        %v1004 = vmul.f32 %v963, 1.442695
        %v1005 = vpow.pop %v1004
        %v1006 = vmul.f32 %v964, 1.442695
        %v1007 = vpow.pop %v1006
        %v1008 = vmul.f32 %v965, 1.442695
        %v1009 = vpow.pop %v1008
        %v1010 = vmul.f32 %v966, 1.442695
        %v1011 = vpow.pop %v1010
        %v1012 = vmul.f32 %v967, 1.442695
        %v1013 = vpow.pop %v1012
        %v1014 = vmul.f32 %v968, 1.442695
        %v1015 = vpow.pop %v1014
        %v1016 = vmul.f32 %v969, 1.442695
        %v1017 = vpow.pop %v1016
        %v1018 = vmul.f32 %v970, 1.442695
        %v1019 = vpow.pop %v1018
        %v1020 = vmul.f32 %v971, 1.442695
        %v1021 = vpow.pop %v1020
        %v1022 = vmul.f32 %v972, 1.442695
        %v1023 = vpow.pop %v1022
        %v1024 = vmul.f32 %v973, 1.442695
        %v1025 = vpow.pop %v1024
        %v1026 = vmul.f32 %v974, 1.442695
        %v1027 = vpow.pop %v1026
        %v1028 = vmul.f32 %v975, 1.442695
        %v1029 = vpow.pop %v1028
        %v1030 = vmul.f32 %v976, 1.442695
        %v1031 = vpow.pop %v1030
        %v1032 = vmul.f32 %v977, 1.442695
        %v1033 = vpow.pop %v1032
        %v1034 = vmul.f32 %v978, 1.442695
        %v1035 = vpow.pop %v1034
        %v1036 = vmul.f32 %v979, 1.442695
        %v1037 = vpow.pop %v1036
        %v1038 = vmul.f32 %v980, 1.442695
        %v1039 = vpow.pop %v1038
        %v1040 = vmul.f32 %v981, 1.442695
        %v1041 = vpow.pop %v1040
        %v1042 = vmul.f32 %v982, 1.442695
        %v1043 = vpow.pop %v1042
        %v1044 = vmul.f32 %v983, 1.442695
        %v1045 = vpow.pop %v1044
        %v1046 = vmul.f32 %v984, 1.442695
        %v1047 = vpow.pop %v1046
        %v1048 = vmul.f32 %v985, 1.442695
        %v1049 = vpow.pop %v1048
        %v1050 = vadd.f32 %v987, 1.0
        %v1051 = vadd.f32 %v989, 1.0
        %v1052 = vadd.f32 %v991, 1.0
        %v1053 = vadd.f32 %v993, 1.0
        %v1054 = vadd.f32 %v995, 1.0
        %v1055 = vadd.f32 %v997, 1.0
        %v1056 = vadd.f32 %v999, 1.0
        %v1057 = vadd.f32 %v1001, 1.0
        %v1058 = vadd.f32 %v1003, 1.0
        %v1059 = vadd.f32 %v1005, 1.0
        %v1060 = vadd.f32 %v1007, 1.0
        %v1061 = vadd.f32 %v1009, 1.0
        %v1062 = vadd.f32 %v1011, 1.0
        %v1063 = vadd.f32 %v1013, 1.0
        %v1064 = vadd.f32 %v1015, 1.0
        %v1065 = vadd.f32 %v1017, 1.0
        %v1066 = vadd.f32 %v1019, 1.0
        %v1067 = vadd.f32 %v1021, 1.0
        %v1068 = vadd.f32 %v1023, 1.0
        %v1069 = vadd.f32 %v1025, 1.0
        %v1070 = vadd.f32 %v1027, 1.0
        %v1071 = vadd.f32 %v1029, 1.0
        %v1072 = vadd.f32 %v1031, 1.0
        %v1073 = vadd.f32 %v1033, 1.0
        %v1074 = vadd.f32 %v1035, 1.0
        %v1075 = vadd.f32 %v1037, 1.0
        %v1076 = vadd.f32 %v1039, 1.0
        %v1077 = vadd.f32 %v1041, 1.0
        %v1078 = vadd.f32 %v1043, 1.0
        %v1079 = vadd.f32 %v1045, 1.0
        %v1080 = vadd.f32 %v1047, 1.0
        %v1081 = vadd.f32 %v1049, 1.0
        %v1082 = vrcp.pop %v1050
        %v1083 = vrcp.pop %v1051
        %v1084 = vrcp.pop %v1052
        %v1085 = vrcp.pop %v1053
        %v1086 = vrcp.pop %v1054
        %v1087 = vrcp.pop %v1055
        %v1088 = vrcp.pop %v1056
        %v1089 = vrcp.pop %v1057
        %v1090 = vrcp.pop %v1058
        %v1091 = vrcp.pop %v1059
        %v1092 = vrcp.pop %v1060
        %v1093 = vrcp.pop %v1061
        %v1094 = vrcp.pop %v1062
        %v1095 = vrcp.pop %v1063
        %v1096 = vrcp.pop %v1064
        %v1097 = vrcp.pop %v1065
        %v1098 = vrcp.pop %v1066
        %v1099 = vrcp.pop %v1067
        %v1100 = vrcp.pop %v1068
        %v1101 = vrcp.pop %v1069
        %v1102 = vrcp.pop %v1070
        %v1103 = vrcp.pop %v1071
        %v1104 = vrcp.pop %v1072
        %v1105 = vrcp.pop %v1073
        %v1106 = vrcp.pop %v1074
        %v1107 = vrcp.pop %v1075
        %v1108 = vrcp.pop %v1076
        %v1109 = vrcp.pop %v1077
        %v1110 = vrcp.pop %v1078
        %v1111 = vrcp.pop %v1079
        %v1112 = vrcp.pop %v1080
        %v1113 = vrcp.pop %v1081
        %1114 = vst [vmem:[%s272] sm:$0xff] %v1082
        %1115 = vst [vmem:[%s272 + $0x8] sm:$0xff] %v1083
        %1116 = vst [vmem:[%s272 + $0x10] sm:$0xff] %v1084
        %1117 = vst [vmem:[%s272 + $0x18] sm:$0xff] %v1085
        %1118 = vst [vmem:[%s272 + $0x20] sm:$0xff] %v1086
        %1119 = vst [vmem:[%s272 + $0x28] sm:$0xff] %v1087
        %1120 = vst [vmem:[%s272 + $0x30] sm:$0xff] %v1088
        %1121 = vst [vmem:[%s272 + $0x38] sm:$0xff] %v1089
        %1122 = vst [vmem:[%s272 + $0x40] sm:$0xff] %v1090
        %1123 = vst [vmem:[%s272 + $0x48] sm:$0xff] %v1091
        %1124 = vst [vmem:[%s272 + $0x50] sm:$0xff] %v1092
        %1125 = vst [vmem:[%s272 + $0x58] sm:$0xff] %v1093
        %1126 = vst [vmem:[%s272 + $0x60] sm:$0xff] %v1094
        %1127 = vst [vmem:[%s272 + $0x68] sm:$0xff] %v1095
        %1128 = vst [vmem:[%s272 + $0x70] sm:$0xff] %v1096
        %1129 = vst [vmem:[%s272 + $0x78] sm:$0xff] %v1097
        %1130 = vst [vmem:[%s272 + $0x80] sm:$0xff] %v1098
        %1131 = vst [vmem:[%s272 + $0x88] sm:$0xff] %v1099
        %1132 = vst [vmem:[%s272 + $0x90] sm:$0xff] %v1100
        %1133 = vst [vmem:[%s272 + $0x98] sm:$0xff] %v1101
        %1134 = vst [vmem:[%s272 + $0xa0] sm:$0xff] %v1102
        %1135 = vst [vmem:[%s272 + $0xa8] sm:$0xff] %v1103
        %1136 = vst [vmem:[%s272 + $0xb0] sm:$0xff] %v1104
        %1137 = vst [vmem:[%s272 + $0xb8] sm:$0xff] %v1105
        %1138 = vst [vmem:[%s272 + $0xc0] sm:$0xff] %v1106
        %1139 = vst [vmem:[%s272 + $0xc8] sm:$0xff] %v1107
        %1140 = vst [vmem:[%s272 + $0xd0] sm:$0xff] %v1108
        %1141 = vst [vmem:[%s272 + $0xd8] sm:$0xff] %v1109
        %1142 = vst [vmem:[%s272 + $0xe0] sm:$0xff] %v1110
        %1143 = vst [vmem:[%s272 + $0xe8] sm:$0xff] %v1111
        %1144 = vst [vmem:[%s272 + $0xf0] sm:$0xff] %v1112
        %1145 = vst [vmem:[%s272 + $0xf8] sm:$0xff] %v1113
        %s1146 = sand.u32 %s181, 1
        %s1147 = scalar_lea.sflag [#allocation3], %s1146
        %s1148 = sand.u32 %s181, 1
        %s1149 = smul.addr %s1148, 256
        %s1150 = scalar_lea.vmem [#allocation2], %s1149
        // Predicated region
        $region49: #{tpu_custom_call.1} parent=47 // pred_check
          %p1151 = pneg %p191
        $region50: #{tpu_custom_call.1} parent=47 // pred_check_branch
          %1153 = sbr.rel (%p1151) target = $region52
        $region51: #{tpu_custom_call.1} parent=47 // pred_region
          %s1154 = smul.u32 32, %s21
          %1156 = vsyncadd %s1147, 0
          %s1157 = smul.addr %s1154, 8
          %s1158 = scalar_lea.hbm %s7, %s1157
          %s1159 = sshll.u32 %s1150, 4
          %s1160 = int_to_ptr.vmem [resolvable:$true] %s1159
          %s1161 = sshll.u32 %s1158, 4
          %s1162 = int_to_ptr.hbm [resolvable:$true] %s1161
          %1167 = dma.vmem_to_hbm [thread:$0]  %s1160, 4096, %s1162, %s1147, 128, 128, 8
        $region52: #{tpu_custom_call.1} parent=47 // pred_fallthru
          _
      $region48: #{tpu_custom_call.1} parent=5 // pred_fallthru
        _
      %p1168 = scmp.le.s32.totalorder 2, %s16
      // Predicated region
      $region53: #{tpu_custom_call.1} parent=5 // pred_check
        %p1169 = pneg %p1168
      $region54: #{tpu_custom_call.1} parent=5 // pred_check_branch
        %1171 = sbr.rel (%p1169) target = $region56
      $region55: #{tpu_custom_call.1} parent=5 // pred_region
        %s1172 = ssub.s32 %s16, 2
        // Predicated region
        $region57: #{tpu_custom_call.1} parent=55 // pred_check
          %p1173 = pneg %p197
        $region58: #{tpu_custom_call.1} parent=55 // pred_check_branch
          %1175 = sbr.rel (%p1173) target = $region60
        $region59: #{tpu_custom_call.1} parent=55 // pred_region
          %s1176 = sand.u32 %s182, 1
          %s1177 = scalar_lea.sflag [#allocation3], %s1176
          %s1178 = sand.u32 %s182, 1
          %s1179 = smul.addr %s1178, 256
          %s1180 = scalar_lea.vmem [#allocation2], %s1179
          %1182 = dma.done %s1177, 4096
        $region60: #{tpu_custom_call.1} parent=55 // pred_fallthru
          _
      $region56: #{tpu_custom_call.1} parent=5 // pred_fallthru
        _
    $region6: #{tpu_custom_call.1} parent=1 // loop_footer
      %s20 = sadd.s32 1, %s16
    $region7: #{tpu_custom_call.1} parent=1 // loop_footer_branch
      %15 = sbr.rel target = $region3
    $region8: #{tpu_custom_call.1} parent=1 // loop_exit
      _
    %1183 = vsyncpa [#allocation3], 1
    %s1184 = scalar_lea.sflag [#allocation3], 1
    %1185 = vsyncpa %s1184, 1

</llo_original>
